<compile_context>
chip_gen: v7x
topology: tpu7x:2x2x1
jax: 0.10.0
libtpu: 0.0.40
codegen_flags: <defaults>
</compile_context>

<pallas_src>
import functools

import jax
import jax.numpy as jnp
from jax.experimental import pallas as pl
from jax.experimental.pallas import tpu as pltpu


def _round_up(x, m):
    return (x + m - 1) // m * m


def _ext_model_kernel(x_ref, w1_ref, b1_ref, w2_ref, b2_ref, o_ref):
    """Per-tile body.

    x:  [Mp, K1]  bf16   (resident across the N grid)
    w1: [K1, Hp]  bf16   (resident)
    b1: [1,  Hp]  f32    (resident)
    w2: [Hp, TN]  bf16   (tile j of the big weight)
    b2: [1,  TN]  f32    (tile j)
    o:  [Mp, TN]  f32    (tile j of the output)
    """
    # linear: embed_size*L -> 2*output_size (tiny; recomputed per N-tile so the
    # grid axis stays embarrassingly parallel).
    h = jnp.dot(x_ref[...], w1_ref[...], preferred_element_type=jnp.float32)
    h = h + b1_ref[...]
    # fc: 2*output_size -> vocab_size*L (tile of width TN).
    y = jnp.dot(h.astype(w2_ref.dtype), w2_ref[...],
                preferred_element_type=jnp.float32)
    o_ref[...] = y + b2_ref[...]


def prepare_params(params, *, vocab_size, max_sequence_length, block_n=2048):
    """One-time: cast weights to bf16 and zero-pad to HW-friendly shapes.

    Keeps the dominant w2 [2*O, V*L] copy/cast OUT of the per-step forward path.
    Returns (prepared_params, geometry_dict).
    """
    embed_table, w1_t, b1, w2_t, b2 = params
    E = embed_table.shape[1]
    L = max_sequence_length
    K1 = E * L                     # linear fan-in
    H = w1_t.shape[1]              # 2 * output_size
    out_dim = vocab_size * L       # fc fan-out

    Hp = max(128, _round_up(H, 128))             # lane/contraction-dense hidden
    TN = min(block_n, _round_up(out_dim, 128))   # lane-dense output tile
    Np = _round_up(out_dim, TN)                  # padded N, exact multiple of TN

    embed_bf16 = embed_table.astype(jnp.bfloat16)
    w1_p = jnp.zeros((K1, Hp), jnp.bfloat16).at[:, :H].set(w1_t.astype(jnp.bfloat16))
    b1_p = jnp.zeros((1, Hp), jnp.float32).at[:, :H].set(b1)
    w2_p = jnp.zeros((Hp, Np), jnp.bfloat16).at[:H, :out_dim].set(
        w2_t.astype(jnp.bfloat16))
    b2_p = jnp.zeros((1, Np), jnp.float32).at[:, :out_dim].set(b2)

    geom = dict(vocab_size=vocab_size, L=L, K1=K1, Hp=Hp, TN=TN, Np=Np,
                out_dim=out_dim)
    return (embed_bf16, w1_p, b1_p, w2_p, b2_p), geom


@functools.partial(
    jax.jit,
    static_argnames=("vocab_size", "L", "K1", "Hp", "TN", "Np", "out_dim"))
def _forward_impl(token_ids, embed_bf16, w1_p, b1_p, w2_p, b2_p, *,
                  vocab_size, L, K1, Hp, TN, Np, out_dim):
    B = token_ids.shape[0]
    Mp = max(8, _round_up(B, 8))                 # sublane multiple for f32 output
    n_tiles = Np // TN

    # ---- glue: embedding gather + row-major flatten (matches .view(B, -1)) ----
    x = jnp.take(embed_bf16, token_ids, axis=0).reshape(B, K1)
    x_p = jnp.zeros((Mp, K1), jnp.bfloat16).at[:B, :].set(x)

    flops = int(2 * Mp * (K1 * Hp * n_tiles + Hp * Np))    # h recomputed per tile
    bytes_accessed = int(Mp * K1 * 2 + K1 * Hp * 2 + Hp * 4
                         + Hp * Np * 2 + Np * 4 + Mp * Np * 4)

    out_p = pl.pallas_call(
        _ext_model_kernel,
        out_shape=jax.ShapeDtypeStruct((Mp, Np), jnp.float32),
        grid_spec=pltpu.PrefetchScalarGridSpec(
            num_scalar_prefetch=0,
            grid=(n_tiles,),
            in_specs=[
                pl.BlockSpec((Mp, K1), lambda j: (0, 0)),   # x     (resident)
                pl.BlockSpec((K1, Hp), lambda j: (0, 0)),   # w1    (resident)
                pl.BlockSpec((1, Hp), lambda j: (0, 0)),    # b1    (resident)
                pl.BlockSpec((Hp, TN), lambda j: (0, j)),   # w2    (streamed)
                pl.BlockSpec((1, TN), lambda j: (0, j)),    # b2    (streamed)
            ],
            out_specs=pl.BlockSpec((Mp, TN), lambda j: (0, j)),
        ),
        compiler_params=pltpu.CompilerParams(
            dimension_semantics=("parallel",),          # megacore-shardable (v7x)
            vmem_limit_bytes=48 * 1024 * 1024,
        ),
        cost_estimate=pl.CostEstimate(
            flops=flops, transcendentals=0, bytes_accessed=bytes_accessed),
    )(x_p, w1_p, b1_p, w2_p, b2_p)

    return out_p[:B, :out_dim].reshape(B, L, vocab_size)


def ext_model_forward(token_ids, prepared_params, geom):
    """token_ids: int32 [B, L].  Returns float32 [B, L, vocab_size]."""
    embed_bf16, w1_p, b1_p, w2_p, b2_p = prepared_params
    return _forward_impl(token_ids, embed_bf16, w1_p, b1_p, w2_p, b2_p, **geom)


def init_params(key, *, embed_size, vocab_size, output_size, max_sequence_length):
    """Deterministic synthetic init mirroring the nn.Module's parameter shapes."""
    k_emb, k_w1, k_b1, k_w2, k_b2 = jax.random.split(key, 5)

    lin_in = embed_size * max_sequence_length
    lin_out = output_size * 2
    fc_out = vocab_size * max_sequence_length

    # nn.Embedding default: N(0, 1)
    embed_table = jax.random.normal(k_emb, (vocab_size, embed_size), jnp.float32)

    # nn.Linear default: U(-1/sqrt(fan_in), 1/sqrt(fan_in)); stored transposed [in, out]
    bound1 = 1.0 / jnp.sqrt(lin_in)
    w1_t = jax.random.uniform(k_w1, (lin_in, lin_out), jnp.float32, -bound1, bound1)
    b1 = jax.random.uniform(k_b1, (1, lin_out), jnp.float32, -bound1, bound1)

    bound2 = 1.0 / jnp.sqrt(lin_out)
    w2_t = jax.random.uniform(k_w2, (lin_out, fc_out), jnp.float32, -bound2, bound2)
    b2 = jax.random.uniform(k_b2, (1, fc_out), jnp.float32, -bound2, bound2)

    return embed_table, w1_t, b1, w2_t, b2


if __name__ == "__main__":
    # Small shapes consistent with the module.
    B = 2
    max_sequence_length = 8
    vocab_size = 32
    embed_size = 16
    output_size = 8

    key = jax.random.PRNGKey(0)
    k_params, k_ids = jax.random.split(key)

    params = init_params(
        k_params,
        embed_size=embed_size,
        vocab_size=vocab_size,
        output_size=output_size,
        max_sequence_length=max_sequence_length,
    )

    prepared, geom = prepare_params(
        params, vocab_size=vocab_size, max_sequence_length=max_sequence_length
    )

    token_ids = jax.random.randint(
        k_ids, (B, max_sequence_length), 0, vocab_size, dtype=jnp.int32
    )

    out = ext_model_forward(token_ids, prepared, geom)
    out = jax.block_until_ready(out)
    assert out.shape == (B, max_sequence_length, vocab_size)

    # Reference 1: same bf16-weight math in pure JAX (tight tolerance).
    embed_table, w1_t, b1, w2_t, b2 = params
    x_flat = jnp.take(embed_table.astype(jnp.bfloat16), token_ids, axis=0
                      ).reshape(B, -1)
    w1b = w1_t.astype(jnp.bfloat16)
    w2b = w2_t.astype(jnp.bfloat16)
    hb = jnp.dot(x_flat, w1b, preferred_element_type=jnp.float32) + b1
    ref_bf16 = (jnp.dot(hb.astype(jnp.bfloat16), w2b,
                        preferred_element_type=jnp.float32) + b2
                ).reshape(B, -1, vocab_size)
    assert jnp.allclose(out, ref_bf16, atol=1e-2, rtol=1e-2)

    # Reference 2: full-precision torch-equivalent math (loose bf16 tolerance).
    x_f32 = jnp.take(embed_table, token_ids, axis=0).reshape(B, -1)
    ref_f32 = ((x_f32 @ w1_t + b1) @ w2_t + b2).reshape(B, -1, vocab_size)
    assert jnp.allclose(out, ref_f32, atol=5e-2, rtol=5e-2)

    print("KERNEL_OK")
</pallas_src>

<mosaic_0001>
module attributes {stable_mosaic.version = 11 : i64} {
  func.func @_ext_model_kernel(%arg0: i32, %arg1: memref<8x128xbf16, #tpu.memory_space<vmem>>, %arg2: memref<128x128xbf16, #tpu.memory_space<vmem>>, %arg3: memref<1x128xf32, #tpu.memory_space<vmem>>, %arg4: memref<128x256xbf16, #tpu.memory_space<vmem>>, %arg5: memref<1x256xf32, #tpu.memory_space<vmem>>, %arg6: memref<8x256xf32, #tpu.memory_space<vmem>>) attributes {dimension_semantics = [#tpu.dimension_semantics<parallel>], iteration_bounds = array<i64: 1>, scalar_prefetch = 0 : i64, scratch_operands = 0 : i64, tpu.core_type = #tpu.core_type<tc>, window_params = [{pipeline_mode = #tpu.pipeline_mode<synchronous>, transform_indices = @transform_0, window_bounds = array<i64: 8, 128>}, {pipeline_mode = #tpu.pipeline_mode<synchronous>, transform_indices = @transform_1, window_bounds = array<i64: 128, 128>}, {pipeline_mode = #tpu.pipeline_mode<synchronous>, transform_indices = @transform_2, window_bounds = array<i64: 1, 128>}, {transform_indices = @transform_3, window_bounds = array<i64: 128, 256>}, {transform_indices = @transform_4, window_bounds = array<i64: 1, 256>}, {transform_indices = @transform_5, window_bounds = array<i64: 8, 256>}]} {
    %c0 = arith.constant 0 : index
    %c0_0 = arith.constant 0 : index
    %0 = vector.load %arg1[%c0, %c0_0] : memref<8x128xbf16, #tpu.memory_space<vmem>>, vector<8x128xbf16>
    %c0_1 = arith.constant 0 : index
    %c0_2 = arith.constant 0 : index
    %1 = vector.load %arg2[%c0_1, %c0_2] : memref<128x128xbf16, #tpu.memory_space<vmem>>, vector<128x128xbf16>
    %cst = arith.constant dense<0.000000e+00> : vector<8x128xf32>
    %2 = tpu.matmul %0, %1, %cst {dimension_numbers = #tpu.dot_dimension_numbers<[1], [0], [0], [1], [0, 0, 1, 1], [], []>} : vector<8x128xbf16>, vector<128x128xbf16>, vector<8x128xf32> -> vector<8x128xf32>
    %c0_3 = arith.constant 0 : index
    %c0_4 = arith.constant 0 : index
    %3 = vector.load %arg3[%c0_3, %c0_4] : memref<1x128xf32, #tpu.memory_space<vmem>>, vector<1x128xf32>
    %4 = vector.broadcast %3 : vector<1x128xf32> to vector<8x128xf32>
    %5 = arith.addf %2, %4 : vector<8x128xf32>
    %6 = arith.truncf %5 : vector<8x128xf32> to vector<8x128xbf16>
    %c0_5 = arith.constant 0 : index
    %c0_6 = arith.constant 0 : index
    %7 = vector.load %arg4[%c0_5, %c0_6] : memref<128x256xbf16, #tpu.memory_space<vmem>>, vector<128x256xbf16>
    %cst_7 = arith.constant dense<0.000000e+00> : vector<8x256xf32>
    %8 = tpu.matmul %6, %7, %cst_7 {dimension_numbers = #tpu.dot_dimension_numbers<[1], [0], [0], [1], [0, 0, 1, 1], [], []>} : vector<8x128xbf16>, vector<128x256xbf16>, vector<8x256xf32> -> vector<8x256xf32>
    %c0_8 = arith.constant 0 : index
    %c0_9 = arith.constant 0 : index
    %9 = vector.load %arg5[%c0_8, %c0_9] : memref<1x256xf32, #tpu.memory_space<vmem>>, vector<1x256xf32>
    %10 = vector.broadcast %9 : vector<1x256xf32> to vector<8x256xf32>
    %11 = arith.addf %8, %10 : vector<8x256xf32>
    %c0_10 = arith.constant 0 : index
    %c0_11 = arith.constant 0 : index
    %12 = vector.load %arg6[%c0_10, %c0_11] : memref<8x256xf32, #tpu.memory_space<vmem>>, vector<8x256xf32>
    tpu.vector_store %arg6[%c0_10, %c0_11], %11 {strides = array<i32>} : memref<8x256xf32, #tpu.memory_space<vmem>>, vector<8x256xf32>,
    return
  }
  func.func @transform_0(%arg0: i32) -> (i32, i32) {
    %c0_i32 = arith.constant 0 : i32
    %c0_i32_0 = arith.constant 0 : i32
    %c0_i32_1 = arith.constant 0 : i32
    return %c0_i32, %c0_i32_0 : i32, i32
  }
  func.func @transform_1(%arg0: i32) -> (i32, i32) {
    %c0_i32 = arith.constant 0 : i32
    %c0_i32_0 = arith.constant 0 : i32
    %c0_i32_1 = arith.constant 0 : i32
    return %c0_i32, %c0_i32_0 : i32, i32
  }
  func.func @transform_2(%arg0: i32) -> (i32, i32) {
    %c0_i32 = arith.constant 0 : i32
    %c0_i32_0 = arith.constant 0 : i32
    %c0_i32_1 = arith.constant 0 : i32
    return %c0_i32, %c0_i32_0 : i32, i32
  }
  func.func @transform_3(%arg0: i32) -> (i32, i32) {
    %c0_i32 = arith.constant 0 : i32
    %c0_i32_0 = arith.constant 0 : i32
    return %c0_i32, %arg0 : i32, i32
  }
  func.func @transform_4(%arg0: i32) -> (i32, i32) {
    %c0_i32 = arith.constant 0 : i32
    %c0_i32_0 = arith.constant 0 : i32
    return %c0_i32, %arg0 : i32, i32
  }
  func.func @transform_5(%arg0: i32) -> (i32, i32) {
    %c0_i32 = arith.constant 0 : i32
    %c0_i32_0 = arith.constant 0 : i32
    return %c0_i32, %arg0 : i32, i32
  }
}

</mosaic_0001>

<llo_original>
// kernel: _forward_impl.1
$region0: #{_forward_impl.1}
  #allocation0 [shape = 'u32[]', space=smem, size = 0x4, offset = 0x4, fixed_abs, tag = 'smem constant byte address 0x4 - core index']
  #allocation1 [shape = 'u32[144,128]{1,0:T(1,128)}', space=vmem, size = 0x12000, scoped, tag = 'internal scratch']
  %s0 = inlined_call_operand.vmem [shape: bf16[8,128], index: 0, kind: input, shape index: {}]
  %s1 = inlined_call_operand.hbm [shape: bf16[128,128], index: 1, kind: input, shape index: {}]
  %s2 = inlined_call_operand.vmem [shape: f32[1,128], index: 2, kind: input, shape index: {}]
  %s3 = inlined_call_operand.vmem [shape: bf16[128,256], index: 3, kind: input, shape index: {}]
  %s4 = inlined_call_operand.vmem [shape: f32[1,256], index: 4, kind: input, shape index: {}]
  %s5 = inlined_call_operand.vmem [shape: f32[8,256], index: 5, kind: output, shape index: {}]
  %s6 = sld [smem:[#allocation0]]
  $region34: #{_forward_impl.1} parent=0
    _
  %s8 = ssub.s32 1, %s6
  %s9 = scalar_select 0, %s8, %s6
  $region1: #{_forward_impl.1} parent=0
    #allocation2 [shape = 'u8[32768]{0}', space=vmem, size = 0x8000, scoped, tag = 'input window, operand 1, single buffered']
    #allocation3 [shape = 's32[1]{0}', space=sflag, size = 0x4, scoped, tag = 'scoped memory for _forward_impl.1']
    %10 = vsyncpa [#allocation3], 0
    // Predicated region
    $region2: #{_forward_impl.1} parent=1 // pred_check
      _
    $region3: #{_forward_impl.1} parent=1 // pred_check_branch
      %12 = sbr.rel (0) target = $region5
    $region4: #{_forward_impl.1} parent=1 // pred_region
      _
    $region5: #{_forward_impl.1} parent=1 // pred_fallthru
      _
    // Predicated region
    $region6: #{_forward_impl.1} parent=1 // pred_check
      _
    $region7: #{_forward_impl.1} parent=1 // pred_check_branch
      %14 = sbr.rel (0) target = $region9
    $region8: #{_forward_impl.1} parent=1 // pred_region
      %s16 = ssub.s32 1024, 1024
      %17 = vsyncadd [#allocation3], %s16
      %s18 = sshll.u32 [#allocation2], 4
      %s19 = int_to_ptr.vmem [resolvable:$true] %s18
      %24 = dma.hbm_to_vmem [thread:$0]  %s1, 1024, %s19, [#allocation3], 64, 64, 4
    $region9: #{_forward_impl.1} parent=1 // pred_fallthru
      _
    // Predicated region
    $region10: #{_forward_impl.1} parent=1 // pred_check
      _
    $region11: #{_forward_impl.1} parent=1 // pred_check_branch
      %26 = sbr.rel (0) target = $region13
    $region12: #{_forward_impl.1} parent=1 // pred_region
      _
    $region13: #{_forward_impl.1} parent=1 // pred_fallthru
      _
    // Predicated region
    $region14: #{_forward_impl.1} parent=1 // pred_check
      _
    $region15: #{_forward_impl.1} parent=1 // pred_check_branch
      %28 = sbr.rel (0) target = $region17
    $region16: #{_forward_impl.1} parent=1 // pred_region
      _
    $region17: #{_forward_impl.1} parent=1 // pred_fallthru
      _
    // Predicated region
    $region18: #{_forward_impl.1} parent=1 // pred_check
      _
    $region19: #{_forward_impl.1} parent=1 // pred_check_branch
      %30 = sbr.rel (0) target = $region21
    $region20: #{_forward_impl.1} parent=1 // pred_region
      _
    $region21: #{_forward_impl.1} parent=1 // pred_fallthru
      _
    // Predicated region
    $region22: #{_forward_impl.1} parent=1 // pred_check
      _
    $region23: #{_forward_impl.1} parent=1 // pred_check_branch
      %32 = sbr.rel (0) target = $region25
    $region24: #{_forward_impl.1} parent=1 // pred_region
      %33 = dma.done [#allocation3], 1024
    $region25: #{_forward_impl.1} parent=1 // pred_fallthru
      _
    %v35 = vld [vmem:[%s0] sm:$0xf]
    %v36 = vld [vmem:[#allocation2] sm:$0xf]
    %v37 = vld [vmem:[#allocation2 + $0x4] sm:$0xf]
    %v38 = vld [vmem:[#allocation2 + $0x8] sm:$0xf]
    %v39 = vld [vmem:[#allocation2 + $0xc] sm:$0xf]
    %v40 = vld [vmem:[#allocation2 + $0x10] sm:$0xf]
    %v41 = vld [vmem:[#allocation2 + $0x14] sm:$0xf]
    %v42 = vld [vmem:[#allocation2 + $0x18] sm:$0xf]
    %v43 = vld [vmem:[#allocation2 + $0x1c] sm:$0xf]
    %v44 = vld [vmem:[#allocation2 + $0x20] sm:$0xf]
    %v45 = vld [vmem:[#allocation2 + $0x24] sm:$0xf]
    %v46 = vld [vmem:[#allocation2 + $0x28] sm:$0xf]
    %v47 = vld [vmem:[#allocation2 + $0x2c] sm:$0xf]
    %v48 = vld [vmem:[#allocation2 + $0x30] sm:$0xf]
    %v49 = vld [vmem:[#allocation2 + $0x34] sm:$0xf]
    %v50 = vld [vmem:[#allocation2 + $0x38] sm:$0xf]
    %v51 = vld [vmem:[#allocation2 + $0x3c] sm:$0xf]
    %v52 = vld [vmem:[%s2] sm:$0x1]
    %v54 = vlaneseq
    %v55 = vshrl.u32 %v54, 7
    %v56 = vsub.s32 0, %v55
    %v57 = vrot.slane %v52, %v56
    %v75 = vunpack.c.l.b16 %v36
    %v76 = vunpack.c.l.b16 %v37
    %v77 = vunpack.c.l.b16 %v38
    %v78 = vunpack.c.l.b16 %v39
    %v79 = vunpack.c.l.b16 %v40
    %v80 = vunpack.c.l.b16 %v41
    %v81 = vunpack.c.l.b16 %v42
    %v82 = vunpack.c.l.b16 %v43
    %v83 = vunpack.c.l.b16 %v44
    %v84 = vunpack.c.l.b16 %v45
    %v85 = vunpack.c.l.b16 %v46
    %v86 = vunpack.c.l.b16 %v47
    %v87 = vunpack.c.l.b16 %v48
    %v88 = vunpack.c.l.b16 %v49
    %v89 = vunpack.c.l.b16 %v50
    %v90 = vunpack.c.l.b16 %v51
    %v91 = vpack.c.b16 %v76, %v75
    %v92 = vpack.c.b16 %v78, %v77
    %v93 = vpack.c.b16 %v80, %v79
    %v94 = vpack.c.b16 %v82, %v81
    %v95 = vpack.c.b16 %v84, %v83
    %v96 = vpack.c.b16 %v86, %v85
    %v97 = vpack.c.b16 %v88, %v87
    %v98 = vpack.c.b16 %v90, %v89
    %107 = vmatprep.subr.bf16.mxu0 0
    %108 = vmatpush1.bf16.msra.mxu0 %v91
    %109 = vmatprep.subr.bf16.mxu0 0
    %110 = vmatpush1.bf16.msra.mxu0 %v92
    %111 = vmatprep.subr.bf16.mxu0 0
    %112 = vmatpush1.bf16.msra.mxu0 %v93
    %113 = vmatprep.subr.bf16.mxu0 0
    %114 = vmatpush1.bf16.msra.mxu0 %v94
    %115 = vmatprep.subr.bf16.mxu0 0
    %116 = vmatpush1.bf16.msra.mxu0 %v95
    %117 = vmatprep.subr.bf16.mxu0 0
    %118 = vmatpush1.bf16.msra.mxu0 %v96
    %119 = vmatprep.subr.bf16.mxu0 0
    %120 = vmatpush1.bf16.msra.mxu0 %v97
    %121 = vmatprep.subr.bf16.mxu0 0
    %122 = vmatpush1.bf16.msra.mxu0 %v98
    %123 = vmatprep.subr.bf16.mxu0 0
    %124 = vmatpush1.bf16.msra.mxu0 0
    %125 = vmatprep.subr.bf16.mxu0 0
    %126 = vmatpush1.bf16.msra.mxu0 0
    %127 = vmatprep.subr.bf16.mxu0 0
    %128 = vmatpush1.bf16.msra.mxu0 0
    %129 = vmatprep.subr.bf16.mxu0 0
    %130 = vmatpush1.bf16.msra.mxu0 0
    %131 = vmatprep.subr.bf16.mxu0 0
    %132 = vmatpush1.bf16.msra.mxu0 0
    %133 = vmatprep.subr.bf16.mxu0 0
    %134 = vmatpush1.bf16.msra.mxu0 0
    %135 = vmatprep.subr.bf16.mxu0 0
    %136 = vmatpush1.bf16.msra.mxu0 0
    %137 = vmatprep.subr.bf16.mxu0 0
    %138 = vmatpush1.bf16.msra.mxu0 0
    %139 = vmatprep.mubr.bf16.mxu0 0
    %140 = vmatmul.mubr.bf16.gmra.mrb[0].mxu0 %v35
    %v141 = vpop.f32.mrb[0].mxu0
    %v142 = vadd.f32 %v57, %v141
    %v143 = vpop.f32.mrb[0].mxu0
    %v144 = vpop.f32.mrb[0].mxu0
    %v145 = vpop.f32.mrb[0].mxu0
    %146 = vdwg.mxu0
    %v147 = vpack.c.bf16 %v142, %v142
    %v148 = vld [vmem:[%s3] sm:$0xff]
    %v149 = vld [vmem:[%s3 + $0x8] sm:$0xff]
    %v150 = vld [vmem:[%s3 + $0x10] sm:$0xff]
    %v151 = vld [vmem:[%s3 + $0x18] sm:$0xff]
    %v152 = vld [vmem:[%s3 + $0x20] sm:$0xff]
    %v153 = vld [vmem:[%s3 + $0x28] sm:$0xff]
    %v154 = vld [vmem:[%s3 + $0x30] sm:$0xff]
    %v155 = vld [vmem:[%s3 + $0x38] sm:$0xff]
    %v156 = vld [vmem:[%s3 + $0x40] sm:$0xff]
    %v157 = vld [vmem:[%s3 + $0x48] sm:$0xff]
    %v158 = vld [vmem:[%s3 + $0x50] sm:$0xff]
    %v159 = vld [vmem:[%s3 + $0x58] sm:$0xff]
    %v160 = vld [vmem:[%s3 + $0x60] sm:$0xff]
    %v161 = vld [vmem:[%s3 + $0x68] sm:$0xff]
    %v162 = vld [vmem:[%s3 + $0x70] sm:$0xff]
    %v163 = vld [vmem:[%s3 + $0x78] sm:$0xff]
    %v164 = vld [vmem:[%s4] sm:$0x3]
    %v166 = vlaneseq
    %v167 = vshrl.u32 %v166, 7
    %v168 = vsub.s32 0, %v167
    %v169 = vrot.slane %v164, %v168
    %v170 = vlaneseq
    %v171 = vshrl.u32 %v170, 7
    %v172 = vsub.s32 1, %v171
    %v173 = vrot.slane %v164, %v172
    %v192 = vunpack.c.l.b16 %v148
    %v193 = vunpack.c.h.b16 %v148
    %v194 = vunpack.c.l.b16 %v149
    %v195 = vunpack.c.h.b16 %v149
    %v196 = vunpack.c.l.b16 %v150
    %v197 = vunpack.c.h.b16 %v150
    %v198 = vunpack.c.l.b16 %v151
    %v199 = vunpack.c.h.b16 %v151
    %v200 = vunpack.c.l.b16 %v152
    %v201 = vunpack.c.h.b16 %v152
    %v202 = vunpack.c.l.b16 %v153
    %v203 = vunpack.c.h.b16 %v153
    %v204 = vunpack.c.l.b16 %v154
    %v205 = vunpack.c.h.b16 %v154
    %v206 = vunpack.c.l.b16 %v155
    %v207 = vunpack.c.h.b16 %v155
    %v208 = vunpack.c.l.b16 %v156
    %v209 = vunpack.c.h.b16 %v156
    %v210 = vunpack.c.l.b16 %v157
    %v211 = vunpack.c.h.b16 %v157
    %v212 = vunpack.c.l.b16 %v158
    %v213 = vunpack.c.h.b16 %v158
    %v214 = vunpack.c.l.b16 %v159
    %v215 = vunpack.c.h.b16 %v159
    %v216 = vunpack.c.l.b16 %v160
    %v217 = vunpack.c.h.b16 %v160
    %v218 = vunpack.c.l.b16 %v161
    %v219 = vunpack.c.h.b16 %v161
    %v220 = vunpack.c.l.b16 %v162
    %v221 = vunpack.c.h.b16 %v162
    %v222 = vunpack.c.l.b16 %v163
    %v223 = vunpack.c.h.b16 %v163
    %v224 = vpack.c.b16 %v194, %v192
    %v225 = vpack.c.b16 %v195, %v193
    %v226 = vpack.c.b16 %v198, %v196
    %v227 = vpack.c.b16 %v199, %v197
    %v228 = vpack.c.b16 %v202, %v200
    %v229 = vpack.c.b16 %v203, %v201
    %v230 = vpack.c.b16 %v206, %v204
    %v231 = vpack.c.b16 %v207, %v205
    %v232 = vpack.c.b16 %v210, %v208
    %v233 = vpack.c.b16 %v211, %v209
    %v234 = vpack.c.b16 %v214, %v212
    %v235 = vpack.c.b16 %v215, %v213
    %v236 = vpack.c.b16 %v218, %v216
    %v237 = vpack.c.b16 %v219, %v217
    %v238 = vpack.c.b16 %v222, %v220
    %v239 = vpack.c.b16 %v223, %v221
    %256 = vmatprep.subr.bf16.mxu0 %v225
    %257 = vmatpush1.bf16.msra.mxu0 %v224
    %258 = vmatprep.subr.bf16.mxu0 %v227
    %259 = vmatpush1.bf16.msra.mxu0 %v226
    %260 = vmatprep.subr.bf16.mxu0 %v229
    %261 = vmatpush1.bf16.msra.mxu0 %v228
    %262 = vmatprep.subr.bf16.mxu0 %v231
    %263 = vmatpush1.bf16.msra.mxu0 %v230
    %264 = vmatprep.subr.bf16.mxu0 %v233
    %265 = vmatpush1.bf16.msra.mxu0 %v232
    %266 = vmatprep.subr.bf16.mxu0 %v235
    %267 = vmatpush1.bf16.msra.mxu0 %v234
    %268 = vmatprep.subr.bf16.mxu0 %v237
    %269 = vmatpush1.bf16.msra.mxu0 %v236
    %270 = vmatprep.subr.bf16.mxu0 %v239
    %271 = vmatpush1.bf16.msra.mxu0 %v238
    %272 = vmatprep.subr.bf16.mxu0 0
    %273 = vmatpush1.bf16.msra.mxu0 0
    %274 = vmatprep.subr.bf16.mxu0 0
    %275 = vmatpush1.bf16.msra.mxu0 0
    %276 = vmatprep.subr.bf16.mxu0 0
    %277 = vmatpush1.bf16.msra.mxu0 0
    %278 = vmatprep.subr.bf16.mxu0 0
    %279 = vmatpush1.bf16.msra.mxu0 0
    %280 = vmatprep.subr.bf16.mxu0 0
    %281 = vmatpush1.bf16.msra.mxu0 0
    %282 = vmatprep.subr.bf16.mxu0 0
    %283 = vmatpush1.bf16.msra.mxu0 0
    %284 = vmatprep.subr.bf16.mxu0 0
    %285 = vmatpush1.bf16.msra.mxu0 0
    %286 = vmatprep.subr.bf16.mxu0 0
    %287 = vmatpush1.bf16.msra.mxu0 0
    %288 = vmatprep.mubr.bf16.mxu0 0
    %289 = vmatmul.mubr.bf16.gmra.mrb[0].mxu0 %v147
    %v290 = vpop.f32.mrb[0].mxu0
    %v291 = vadd.f32 %v169, %v290
    %v292 = vpop.f32.mrb[0].mxu0
    %v293 = vadd.f32 %v173, %v292
    %v294 = vpop.f32.mrb[0].mxu0
    %v295 = vpop.f32.mrb[0].mxu0
    %296 = vdwg.mxu0
    %297 = vst [vmem:[%s5] sm:$0xff] %v291
    %298 = vst [vmem:[%s5 + $0x8] sm:$0xff] %v293
    // Predicated region
    $region26: #{_forward_impl.1} parent=1 // pred_check
      _
    $region27: #{_forward_impl.1} parent=1 // pred_check_branch
      %300 = sbr.rel (0) target = $region29
    $region28: #{_forward_impl.1} parent=1 // pred_region
      _
    $region29: #{_forward_impl.1} parent=1 // pred_fallthru
      _
    // Predicated region
    $region30: #{_forward_impl.1} parent=1 // pred_check
      _
    $region31: #{_forward_impl.1} parent=1 // pred_check_branch
      %302 = sbr.rel (0) target = $region33
    $region32: #{_forward_impl.1} parent=1 // pred_region
      _
    $region33: #{_forward_impl.1} parent=1 // pred_fallthru
      _
    %303 = vsyncpa [#allocation3], 1

</llo_original>
